<compile_context>
chip_gen: v7x
topology: tpu7x:2x2x1
jax: 0.10.0
libtpu: 0.0.40
codegen_flags: <defaults>
</compile_context>

<pallas_src>
import math

import jax
import jax.numpy as jnp
import numpy as np
from jax.experimental import pallas as pl
from jax.experimental.pallas import tpu as pltpu


def _round_up(x, m):
    return ((x + m - 1) // m) * m


def _calculate_split_sizes(total_neurons, num_splits):
    base, rem = divmod(total_neurons, num_splits)
    return [base + 1 if i < rem else base for i in range(num_splits)]


def _choose_tile_b(B, tile_b_max=1024, two_core_min_batch=256):
    """Pick a batch tile (multiple of 128) minimising padding; keep >=2 grid
    steps for large B so both v7x TensorCores get work."""
    tile_b_max = max(128, (tile_b_max // 128) * 128)
    best = None
    for t in range(128, tile_b_max + 1, 128):
        b_pad = _round_up(max(B, 1), t)
        steps = b_pad // t
        if B >= two_core_min_batch and steps < 2 and t > 128:
            continue  # a 1-step grid leaves one v7x TC idle
        # minimise padding; tie-break: prefer an even number of steps, then the
        # biggest tile (fewest ~0.35us per-step overheads).
        key = (b_pad, steps % 2, -t)
        if best is None or key < best[0]:
            best = (key, t, b_pad)
    _, tile_b, b_pad = best
    return tile_b, b_pad


# ----------------------------------------------------------------------------
# Kernel
# ----------------------------------------------------------------------------
def _make_multionet_kernel(layer_modes, outputs):
    """refs = [x, (W_T_0, b_0[, mask_0]), ..., S_pad, out]

    x:    [in_total, TILE_B]        packed branch|trunk input (batch on lanes)
    W_T_i:[out_i, in_i]             block-diag fused transposed weight
    b_i:  [out_i, 1]                fused bias column (f32)
    mask_i:[out_i, 1]               1.0 where ReLU applies (only when the two
                                    nets disagree on depth), 0.0 elsewhere
    S_pad:[N_pad, outputs]          0/1 segment matrix, rows padded to mult of 8
    out:  [N_pad, TILE_B]           lane-dense output block
    """

    def kernel(*refs):
        x = refs[0][...]
        idx = 1
        for mode in layer_modes:
            w = refs[idx][...]
            b = refs[idx + 1][...]
            idx += 2
            xin = x if x.dtype == w.dtype else x.astype(w.dtype)
            y = jnp.dot(w, xin, preferred_element_type=jnp.float32)
            y = y + b  # f32 bias-add on the VPU
            if mode == "full":
                y = jnp.maximum(y, 0.0)
            elif mode == "mask":
                m = refs[idx][...]  # constant [out_i, 1] mask, hoisted
                idx += 1
                # m==1 -> relu(y), m==0 -> y  (exact in f32)
                y = y + m * (jnp.maximum(y, 0.0) - y)
            x = y  # f32 activations carried between layers

        s_ref = refs[idx]
        out_ref = refs[idx + 1]

        branch = x[:outputs, :]                 # [outputs, TILE_B]
        trunk = x[outputs:2 * outputs, :]       # [outputs, TILE_B]
        prod = branch * trunk
        # Segmented sums (torch.split + sum(dim=1) + cat) as one small MXU
        # matmul; no transpose needed in this layout.
        out_ref[...] = jnp.dot(s_ref[...], prod,
                               preferred_element_type=jnp.float32)

    return kernel


# ----------------------------------------------------------------------------
# One-time preparation (numpy; out of the per-call hot path)
# ----------------------------------------------------------------------------
def _prepare_multionet(branch_params, trunk_params, outputs, n_splits,
                       compute_dtype):
    def _as_np(p):
        return np.asarray(p[0], np.float32), np.asarray(p[1], np.float32)

    nb, nt = len(branch_params), len(trunk_params)
    num_layers = max(nb, nt)

    layers = []
    for i in range(num_layers):
        if i < nb:
            wb, bb = _as_np(branch_params[i])
            rb = i < nb - 1
        else:  # branch already produced its output: identity pass-through
            wb = np.eye(outputs, dtype=np.float32)
            bb = np.zeros((outputs,), np.float32)
            rb = False
        if i < nt:
            wt, bt = _as_np(trunk_params[i])
            rt = i < nt - 1
        else:
            wt = np.eye(outputs, dtype=np.float32)
            bt = np.zeros((outputs,), np.float32)
            rt = False

        in_i = wb.shape[0] + wt.shape[0]
        out_i = wb.shape[1] + wt.shape[1]
        w_t = np.zeros((out_i, in_i), np.float32)         # block-diag, transposed
        w_t[:wb.shape[1], :wb.shape[0]] = wb.T
        w_t[wb.shape[1]:, wb.shape[0]:] = wt.T
        b = np.concatenate([bb, bt]).reshape(-1, 1)

        if rb and rt:
            mode, mask = "full", None
        elif rb or rt:
            mode = "mask"
            mask = np.zeros((out_i, 1), np.float32)
            if rb:
                mask[:wb.shape[1]] = 1.0
            else:
                mask[wb.shape[1]:] = 1.0
        else:
            mode, mask = "none", None

        layers.append(dict(
            w_t=jnp.asarray(w_t, dtype=compute_dtype),
            b=jnp.asarray(b, dtype=jnp.float32),
            mask=None if mask is None else jnp.asarray(mask, dtype=jnp.float32),
            mode=mode,
            in_i=in_i, out_i=out_i,
        ))

    # segment matrix, rows padded to a multiple of 8 sublanes (unmasked stores)
    sizes = _calculate_split_sizes(outputs, n_splits)
    n_pad = max(8, _round_up(n_splits, 8))
    s = np.zeros((n_pad, outputs), np.float32)
    start = 0
    for r, sz in enumerate(sizes):
        s[r, start:start + sz] = 1.0
        start += sz

    return dict(layers=layers, s=jnp.asarray(s), n_pad=n_pad,
                in_total=layers[0]["in_i"])


# ----------------------------------------------------------------------------
# Forward factory
# ----------------------------------------------------------------------------
def make_multionet_forward(branch_params, trunk_params, outputs, n_splits,
                           compute_dtype=jnp.float32, tile_b_max=1024,
                           return_transposed=False):
    """Returns a jitted forward(branch_input[B,in_b], trunk_input[B,in_t]) ->
    [B, n_splits] (or [n_splits, B] if return_transposed)."""
    prep = _prepare_multionet(branch_params, trunk_params, outputs, n_splits,
                              compute_dtype)
    layer_modes = tuple(l["mode"] for l in prep["layers"])
    n_pad = prep["n_pad"]
    in_total = prep["in_total"]
    layer_dims = tuple((l["out_i"], l["in_i"]) for l in prep["layers"])

    weight_args = []
    for l in prep["layers"]:
        weight_args.append(l["w_t"])
        weight_args.append(l["b"])
        if l["mode"] == "mask":
            weight_args.append(l["mask"])
    weight_args.append(prep["s"])
    weight_args = tuple(weight_args)

    kernel = _make_multionet_kernel(layer_modes, outputs)
    in_dtype = jnp.dtype(compute_dtype)

    @jax.jit
    def forward(branch_input, trunk_input):
        B = branch_input.shape[0]
        tile_b, b_pad = _choose_tile_b(B, tile_b_max)
        grid = (b_pad // tile_b,)

        # [B, in_b+in_t] -> [in_total, b_pad]  (batch on the lane axis)
        x = jnp.concatenate([branch_input, trunk_input], axis=1)
        x = x.astype(compute_dtype).T
        if b_pad != B:
            x = jnp.pad(x, ((0, 0), (0, b_pad - B)))

        in_specs = [pl.BlockSpec((in_total, tile_b), lambda i: (0, i))]
        for a in weight_args:
            in_specs.append(pl.BlockSpec(a.shape, lambda i: (0, 0)))  # VMEM-resident

        out_specs = pl.BlockSpec((n_pad, tile_b), lambda i: (0, i))
        out_shape = jax.ShapeDtypeStruct((n_pad, b_pad), jnp.float32)

        flops = sum(2 * b_pad * o * k for (o, k) in layer_dims)
        flops += b_pad * outputs + 2 * b_pad * outputs * n_pad
        bytes_accessed = in_total * b_pad * in_dtype.itemsize
        bytes_accessed += sum(int(np.prod(a.shape)) * a.dtype.itemsize
                              for a in weight_args)
        bytes_accessed += n_pad * b_pad * 4

        out = pl.pallas_call(
            kernel,
            out_shape=out_shape,
            grid=grid,
            in_specs=in_specs,
            out_specs=out_specs,
            compiler_params=pltpu.CompilerParams(
                dimension_semantics=("parallel",),   # 2-TC sharding on v7x
                vmem_limit_bytes=32 * 1024 * 1024,   # guardrail; footprint ~2 MiB
            ),
            cost_estimate=pl.CostEstimate(flops=int(flops), transcendentals=0,
                                          bytes_accessed=int(bytes_accessed)),
        )(x, *weight_args)

        out = out[:n_splits, :B]
        if return_transposed:
            return out                    # [n_splits, B] (no extra transpose)
        return out.T                      # [B, n_splits], matches torch.cat(dim=1)

    return forward


# ----------------------------------------------------------------------------
# Reference + init
# ----------------------------------------------------------------------------
def _init_mlp_params(key, input_size, hidden_size, output_size, num_hidden_layers):
    dims = [input_size] + [hidden_size] * num_hidden_layers + [output_size]
    params = []
    for i in range(len(dims) - 1):
        key, kw, kb = jax.random.split(key, 3)
        scale = 1.0 / math.sqrt(dims[i])
        w = jax.random.uniform(kw, (dims[i], dims[i + 1]), jnp.float32, -scale, scale)
        b = jax.random.uniform(kb, (dims[i + 1],), jnp.float32, -scale, scale)
        params.append((w, b))
    return params, key


def _reference_forward(branch_input, trunk_input, branch_params, trunk_params,
                       outputs, n_splits):
    def mlp(x, params):
        for i, (w, b) in enumerate(params):
            x = x @ w + b
            if i < len(params) - 1:
                x = jnp.maximum(x, 0.0)
        return x

    bo = mlp(branch_input, branch_params)
    to = mlp(trunk_input, trunk_params)
    sizes = _calculate_split_sizes(outputs, n_splits)
    result, start = [], 0
    for sz in sizes:
        result.append(jnp.sum(bo[:, start:start + sz] * to[:, start:start + sz],
                              axis=1, keepdims=True))
        start += sz
    return jnp.concatenate(result, axis=1)


if __name__ == "__main__":
    key = jax.random.PRNGKey(0)

    # Config 1: MultiONet(16,32,2, 8,32,2, outputs=32, N=4) — equal depths.
    inputs_b, hidden_b, layers_b = 16, 32, 2
    inputs_t, hidden_t, layers_t = 8, 32, 2
    outputs, n_splits = 32, 4

    branch_params, key = _init_mlp_params(key, inputs_b, hidden_b, outputs, layers_b)
    trunk_params, key = _init_mlp_params(key, inputs_t, hidden_t, outputs, layers_t)

    fwd_f32 = make_multionet_forward(branch_params, trunk_params, outputs, n_splits,
                                     compute_dtype=jnp.float32)
    fwd_bf16 = make_multionet_forward(branch_params, trunk_params, outputs, n_splits,
                                      compute_dtype=jnp.bfloat16)

    for B in (8, 300):  # single-tile path and multi-tile (remainder-padded) path
        key, k1, k2 = jax.random.split(key, 3)
        bi = jax.random.normal(k1, (B, inputs_b), jnp.float32)
        ti = jax.random.normal(k2, (B, inputs_t), jnp.float32)
        ref = _reference_forward(bi, ti, branch_params, trunk_params, outputs, n_splits)

        out = jax.block_until_ready(fwd_f32(bi, ti))          # f32 exact path
        assert out.shape == (B, n_splits)
        assert jnp.allclose(out, ref, rtol=1e-5, atol=1e-5)

        out_bf = jax.block_until_ready(fwd_bf16(bi, ti))       # bf16 MXU operands
        assert out_bf.shape == (B, n_splits)
        assert jnp.allclose(out_bf, ref, rtol=5e-2, atol=5e-2)

    # Config 2: unequal depths -> exercises the masked-ReLU / identity path.
    layers_b2, layers_t2 = 3, 2
    branch_params2, key = _init_mlp_params(key, inputs_b, hidden_b, outputs, layers_b2)
    trunk_params2, key = _init_mlp_params(key, inputs_t, hidden_t, outputs, layers_t2)
    fwd2 = make_multionet_forward(branch_params2, trunk_params2, outputs, n_splits,
                                  compute_dtype=jnp.float32)
    B = 64
    key, k1, k2 = jax.random.split(key, 3)
    bi = jax.random.normal(k1, (B, inputs_b), jnp.float32)
    ti = jax.random.normal(k2, (B, inputs_t), jnp.float32)
    ref2 = _reference_forward(bi, ti, branch_params2, trunk_params2, outputs, n_splits)
    out2 = jax.block_until_ready(fwd2(bi, ti))
    assert out2.shape == (B, n_splits)
    assert jnp.allclose(out2, ref2, rtol=1e-5, atol=1e-5)

    print("KERNEL_OK")
</pallas_src>

<mosaic_0001>
module attributes {stable_mosaic.version = 11 : i64} {
  func.func @kernel(%arg0: i32, %arg1: memref<24x128xf32, #tpu.memory_space<vmem>>, %arg2: memref<64x24xf32, #tpu.memory_space<vmem>>, %arg3: memref<64x1xf32, #tpu.memory_space<vmem>>, %arg4: memref<64x64xf32, #tpu.memory_space<vmem>>, %arg5: memref<64x1xf32, #tpu.memory_space<vmem>>, %arg6: memref<64x64xf32, #tpu.memory_space<vmem>>, %arg7: memref<64x1xf32, #tpu.memory_space<vmem>>, %arg8: memref<8x32xf32, #tpu.memory_space<vmem>>, %arg9: memref<8x128xf32, #tpu.memory_space<vmem>>) attributes {dimension_semantics = [#tpu.dimension_semantics<parallel>], iteration_bounds = array<i64: 1>, scalar_prefetch = 0 : i64, scratch_operands = 0 : i64, tpu.core_type = #tpu.core_type<tc>, window_params = [{transform_indices = @transform_0, window_bounds = array<i64: 24, 128>}, {pipeline_mode = #tpu.pipeline_mode<synchronous>, transform_indices = @transform_1, window_bounds = array<i64: 64, 24>}, {pipeline_mode = #tpu.pipeline_mode<synchronous>, transform_indices = @transform_2, window_bounds = array<i64: 64, 1>}, {pipeline_mode = #tpu.pipeline_mode<synchronous>, transform_indices = @transform_3, window_bounds = array<i64: 64, 64>}, {pipeline_mode = #tpu.pipeline_mode<synchronous>, transform_indices = @transform_4, window_bounds = array<i64: 64, 1>}, {pipeline_mode = #tpu.pipeline_mode<synchronous>, transform_indices = @transform_5, window_bounds = array<i64: 64, 64>}, {pipeline_mode = #tpu.pipeline_mode<synchronous>, transform_indices = @transform_6, window_bounds = array<i64: 64, 1>}, {pipeline_mode = #tpu.pipeline_mode<synchronous>, transform_indices = @transform_7, window_bounds = array<i64: 8, 32>}, {transform_indices = @transform_8, window_bounds = array<i64: 8, 128>}]} {
    %c0 = arith.constant 0 : index
    %c0_0 = arith.constant 0 : index
    %0 = vector.load %arg1[%c0, %c0_0] : memref<24x128xf32, #tpu.memory_space<vmem>>, vector<24x128xf32>
    %c0_1 = arith.constant 0 : index
    %c0_2 = arith.constant 0 : index
    %1 = vector.load %arg2[%c0_1, %c0_2] : memref<64x24xf32, #tpu.memory_space<vmem>>, vector<64x24xf32>
    %c0_3 = arith.constant 0 : index
    %c0_4 = arith.constant 0 : index
    %2 = vector.load %arg3[%c0_3, %c0_4] : memref<64x1xf32, #tpu.memory_space<vmem>>, vector<64x1xf32>
    %cst = arith.constant dense<0.000000e+00> : vector<64x128xf32>
    %3 = tpu.matmul %1, %0, %cst {dimension_numbers = #tpu.dot_dimension_numbers<[1], [0], [0], [1], [0, 0, 1, 1], [], []>} : vector<64x24xf32>, vector<24x128xf32>, vector<64x128xf32> -> vector<64x128xf32>
    %4 = vector.broadcast %2 : vector<64x1xf32> to vector<64x128xf32>
    %5 = arith.addf %3, %4 : vector<64x128xf32>
    %cst_5 = arith.constant 0.000000e+00 : f32
    %6 = vector.broadcast %cst_5 : f32 to vector<64x128xf32>
    %7 = arith.maximumf %5, %6 : vector<64x128xf32>
    %c0_6 = arith.constant 0 : index
    %c0_7 = arith.constant 0 : index
    %8 = vector.load %arg4[%c0_6, %c0_7] : memref<64x64xf32, #tpu.memory_space<vmem>>, vector<64x64xf32>
    %c0_8 = arith.constant 0 : index
    %c0_9 = arith.constant 0 : index
    %9 = vector.load %arg5[%c0_8, %c0_9] : memref<64x1xf32, #tpu.memory_space<vmem>>, vector<64x1xf32>
    %cst_10 = arith.constant dense<0.000000e+00> : vector<64x128xf32>
    %10 = tpu.matmul %8, %7, %cst_10 {dimension_numbers = #tpu.dot_dimension_numbers<[1], [0], [0], [1], [0, 0, 1, 1], [], []>} : vector<64x64xf32>, vector<64x128xf32>, vector<64x128xf32> -> vector<64x128xf32>
    %11 = vector.broadcast %9 : vector<64x1xf32> to vector<64x128xf32>
    %12 = arith.addf %10, %11 : vector<64x128xf32>
    %cst_11 = arith.constant 0.000000e+00 : f32
    %13 = vector.broadcast %cst_11 : f32 to vector<64x128xf32>
    %14 = arith.maximumf %12, %13 : vector<64x128xf32>
    %c0_12 = arith.constant 0 : index
    %c0_13 = arith.constant 0 : index
    %15 = vector.load %arg6[%c0_12, %c0_13] : memref<64x64xf32, #tpu.memory_space<vmem>>, vector<64x64xf32>
    %c0_14 = arith.constant 0 : index
    %c0_15 = arith.constant 0 : index
    %16 = vector.load %arg7[%c0_14, %c0_15] : memref<64x1xf32, #tpu.memory_space<vmem>>, vector<64x1xf32>
    %cst_16 = arith.constant dense<0.000000e+00> : vector<64x128xf32>
    %17 = tpu.matmul %15, %14, %cst_16 {dimension_numbers = #tpu.dot_dimension_numbers<[1], [0], [0], [1], [0, 0, 1, 1], [], []>} : vector<64x64xf32>, vector<64x128xf32>, vector<64x128xf32> -> vector<64x128xf32>
    %18 = vector.broadcast %16 : vector<64x1xf32> to vector<64x128xf32>
    %19 = arith.addf %17, %18 : vector<64x128xf32>
    %20 = vector.extract_strided_slice %19 {offsets = [0, 0], sizes = [32, 128], strides = [1, 1]} : vector<64x128xf32> to vector<32x128xf32>
    %21 = vector.extract_strided_slice %19 {offsets = [32, 0], sizes = [32, 128], strides = [1, 1]} : vector<64x128xf32> to vector<32x128xf32>
    %22 = arith.mulf %20, %21 : vector<32x128xf32>
    %c0_17 = arith.constant 0 : index
    %c0_18 = arith.constant 0 : index
    %23 = vector.load %arg8[%c0_17, %c0_18] : memref<8x32xf32, #tpu.memory_space<vmem>>, vector<8x32xf32>
    %cst_19 = arith.constant dense<0.000000e+00> : vector<8x128xf32>
    %24 = tpu.matmul %23, %22, %cst_19 {dimension_numbers = #tpu.dot_dimension_numbers<[1], [0], [0], [1], [0, 0, 1, 1], [], []>} : vector<8x32xf32>, vector<32x128xf32>, vector<8x128xf32> -> vector<8x128xf32>
    %c0_20 = arith.constant 0 : index
    %c0_21 = arith.constant 0 : index
    %25 = vector.load %arg9[%c0_20, %c0_21] : memref<8x128xf32, #tpu.memory_space<vmem>>, vector<8x128xf32>
    tpu.vector_store %arg9[%c0_20, %c0_21], %24 {strides = array<i32>} : memref<8x128xf32, #tpu.memory_space<vmem>>, vector<8x128xf32>,
    return
  }
  func.func @transform_0(%arg0: i32) -> (i32, i32) {
    %c0_i32 = arith.constant 0 : i32
    %c0_i32_0 = arith.constant 0 : i32
    return %c0_i32, %arg0 : i32, i32
  }
  func.func @transform_1(%arg0: i32) -> (i32, i32) {
    %c0_i32 = arith.constant 0 : i32
    %c0_i32_0 = arith.constant 0 : i32
    %c0_i32_1 = arith.constant 0 : i32
    return %c0_i32, %c0_i32_0 : i32, i32
  }
  func.func @transform_2(%arg0: i32) -> (i32, i32) {
    %c0_i32 = arith.constant 0 : i32
    %c0_i32_0 = arith.constant 0 : i32
    %c0_i32_1 = arith.constant 0 : i32
    return %c0_i32, %c0_i32_0 : i32, i32
  }
  func.func @transform_3(%arg0: i32) -> (i32, i32) {
    %c0_i32 = arith.constant 0 : i32
    %c0_i32_0 = arith.constant 0 : i32
    %c0_i32_1 = arith.constant 0 : i32
    return %c0_i32, %c0_i32_0 : i32, i32
  }
  func.func @transform_4(%arg0: i32) -> (i32, i32) {
    %c0_i32 = arith.constant 0 : i32
    %c0_i32_0 = arith.constant 0 : i32
    %c0_i32_1 = arith.constant 0 : i32
    return %c0_i32, %c0_i32_0 : i32, i32
  }
  func.func @transform_5(%arg0: i32) -> (i32, i32) {
    %c0_i32 = arith.constant 0 : i32
    %c0_i32_0 = arith.constant 0 : i32
    %c0_i32_1 = arith.constant 0 : i32
    return %c0_i32, %c0_i32_0 : i32, i32
  }
  func.func @transform_6(%arg0: i32) -> (i32, i32) {
    %c0_i32 = arith.constant 0 : i32
    %c0_i32_0 = arith.constant 0 : i32
    %c0_i32_1 = arith.constant 0 : i32
    return %c0_i32, %c0_i32_0 : i32, i32
  }
  func.func @transform_7(%arg0: i32) -> (i32, i32) {
    %c0_i32 = arith.constant 0 : i32
    %c0_i32_0 = arith.constant 0 : i32
    %c0_i32_1 = arith.constant 0 : i32
    return %c0_i32, %c0_i32_0 : i32, i32
  }
  func.func @transform_8(%arg0: i32) -> (i32, i32) {
    %c0_i32 = arith.constant 0 : i32
    %c0_i32_0 = arith.constant 0 : i32
    return %c0_i32, %arg0 : i32, i32
  }
}

</mosaic_0001>

<llo_original>
// kernel: forward.1
$region0: #{forward.1}
  #allocation0 [shape = 'u32[]', space=smem, size = 0x4, offset = 0x4, fixed_abs, tag = 'smem constant byte address 0x4 - core index']
  #allocation1 [shape = 'u32[144,128]{1,0:T(1,128)}', space=vmem, size = 0x12000, scoped, tag = 'internal scratch']
  %s0 = inlined_call_operand.vmem [shape: f32[24,128], index: 0, kind: input, shape index: {}]
  %s1 = inlined_call_operand.hbm [shape: f32[64,24], index: 1, kind: input, shape index: {}]
  %s2 = inlined_call_operand.hbm [shape: f32[64,1], index: 2, kind: input, shape index: {}]
  %s3 = inlined_call_operand.hbm [shape: f32[64,64], index: 3, kind: input, shape index: {}]
  %s4 = inlined_call_operand.hbm [shape: f32[64,1], index: 4, kind: input, shape index: {}]
  %s5 = inlined_call_operand.vmem [shape: f32[64,64], index: 5, kind: input, shape index: {}]
  %s6 = inlined_call_operand.vmem [shape: f32[64,1], index: 6, kind: input, shape index: {}]
  %s7 = inlined_call_operand.vmem [shape: f32[8,32], index: 7, kind: input, shape index: {}]
  %s8 = inlined_call_operand.vmem [shape: f32[8,128], index: 8, kind: output, shape index: {}]
  %s9 = sld [smem:[#allocation0]]
  $region58: #{forward.1} parent=0
    _
  %s11 = ssub.s32 1, %s9
  %s12 = scalar_select 0, %s11, %s9
  $region1: #{forward.1} parent=0
    #allocation2 [shape = 'u8[32768]{0}', space=vmem, size = 0x8000, scoped, tag = 'input window, operand 1, single buffered']
    #allocation3 [shape = 's32[1]{0}', space=sflag, size = 0x4, scoped, tag = 'scoped memory for forward.1']
    #allocation4 [shape = 'u8[32768]{0}', space=vmem, size = 0x8000, scoped, tag = 'input window, operand 2, single buffered']
    #allocation5 [shape = 's32[1]{0}', space=sflag, size = 0x4, scoped, tag = 'scoped memory for forward.1']
    #allocation6 [shape = 'u8[32768]{0}', space=vmem, size = 0x8000, scoped, tag = 'input window, operand 3, single buffered']
    #allocation7 [shape = 'u8[32768]{0}', space=vmem, size = 0x8000, scoped, tag = 'input window, operand 4, single buffered']
    #allocation8 [shape = 's32[1]{0}', space=sflag, size = 0x4, scoped, tag = 'scoped memory for forward.1']
    %13 = vsyncpa [#allocation3], 0
    %14 = vsyncpa [#allocation5], 0
    %15 = vsyncpa [#allocation8], 0
    // Predicated region
    $region2: #{forward.1} parent=1 // pred_check
      _
    $region3: #{forward.1} parent=1 // pred_check_branch
      %17 = sbr.rel (0) target = $region5
    $region4: #{forward.1} parent=1 // pred_region
      _
    $region5: #{forward.1} parent=1 // pred_fallthru
      _
    // Predicated region
    $region6: #{forward.1} parent=1 // pred_check
      _
    $region7: #{forward.1} parent=1 // pred_check_branch
      %19 = sbr.rel (0) target = $region9
    $region8: #{forward.1} parent=1 // pred_region
      %s21 = ssub.s32 1024, 1024
      %22 = vsyncadd [#allocation3], %s21
      %s23 = sshll.u32 [#allocation2], 4
      %s24 = int_to_ptr.vmem [resolvable:$true] %s23
      %29 = dma.hbm_to_vmem [thread:$0]  %s1, 1024, %s24, [#allocation3], 128, 128, 8
    $region9: #{forward.1} parent=1 // pred_fallthru
      _
    // Predicated region
    $region10: #{forward.1} parent=1 // pred_check
      _
    $region11: #{forward.1} parent=1 // pred_check_branch
      %31 = sbr.rel (0) target = $region13
    $region12: #{forward.1} parent=1 // pred_region
      %s33 = ssub.s32 1024, 1024
      %34 = vsyncadd [#allocation5], %s33
      %s35 = sshll.u32 [#allocation4], 4
      %s36 = int_to_ptr.vmem [resolvable:$true] %s35
      %41 = dma.hbm_to_vmem [thread:$0]  %s2, 1024, %s36, [#allocation5], 128, 128, 8
    $region13: #{forward.1} parent=1 // pred_fallthru
      _
    // Predicated region
    $region14: #{forward.1} parent=1 // pred_check
      _
    $region15: #{forward.1} parent=1 // pred_check_branch
      %43 = sbr.rel (0) target = $region17
    $region16: #{forward.1} parent=1 // pred_region
      %s45 = ssub.s32 1024, 1024
      %46 = vsyncadd [#allocation5], %s45
      %s47 = sshll.u32 [#allocation6], 4
      %s48 = int_to_ptr.vmem [resolvable:$true] %s47
      %53 = dma.hbm_to_vmem [thread:$0]  %s3, 1024, %s48, [#allocation5], 128, 128, 8
    $region17: #{forward.1} parent=1 // pred_fallthru
      _
    // Predicated region
    $region18: #{forward.1} parent=1 // pred_check
      _
    $region19: #{forward.1} parent=1 // pred_check_branch
      %55 = sbr.rel (0) target = $region21
    $region20: #{forward.1} parent=1 // pred_region
      %s57 = ssub.s32 1024, 1024
      %58 = vsyncadd [#allocation8], %s57
      %s59 = sshll.u32 [#allocation7], 4
      %s60 = int_to_ptr.vmem [resolvable:$true] %s59
      %65 = dma.hbm_to_vmem [thread:$0]  %s4, 1024, %s60, [#allocation8], 128, 128, 8
    $region21: #{forward.1} parent=1 // pred_fallthru
      _
    // Predicated region
    $region22: #{forward.1} parent=1 // pred_check
      _
    $region23: #{forward.1} parent=1 // pred_check_branch
      %67 = sbr.rel (0) target = $region25
    $region24: #{forward.1} parent=1 // pred_region
      _
    $region25: #{forward.1} parent=1 // pred_fallthru
      _
    // Predicated region
    $region26: #{forward.1} parent=1 // pred_check
      _
    $region27: #{forward.1} parent=1 // pred_check_branch
      %69 = sbr.rel (0) target = $region29
    $region28: #{forward.1} parent=1 // pred_region
      _
    $region29: #{forward.1} parent=1 // pred_fallthru
      _
    // Predicated region
    $region30: #{forward.1} parent=1 // pred_check
      _
    $region31: #{forward.1} parent=1 // pred_check_branch
      %71 = sbr.rel (0) target = $region33
    $region32: #{forward.1} parent=1 // pred_region
      _
    $region33: #{forward.1} parent=1 // pred_fallthru
      _
    // Predicated region
    $region34: #{forward.1} parent=1 // pred_check
      _
    $region35: #{forward.1} parent=1 // pred_check_branch
      %73 = sbr.rel (0) target = $region37
    $region36: #{forward.1} parent=1 // pred_region
      %74 = dma.done [#allocation3], 1024
    $region37: #{forward.1} parent=1 // pred_fallthru
      _
    // Predicated region
    $region38: #{forward.1} parent=1 // pred_check
      _
    $region39: #{forward.1} parent=1 // pred_check_branch
      %76 = sbr.rel (0) target = $region41
    $region40: #{forward.1} parent=1 // pred_region
      %77 = dma.done [#allocation5], 1024
    $region41: #{forward.1} parent=1 // pred_fallthru
      _
    // Predicated region
    $region42: #{forward.1} parent=1 // pred_check
      _
    $region43: #{forward.1} parent=1 // pred_check_branch
      %79 = sbr.rel (0) target = $region45
    $region44: #{forward.1} parent=1 // pred_region
      %80 = dma.done [#allocation5], 1024
    $region45: #{forward.1} parent=1 // pred_fallthru
      _
    // Predicated region
    $region46: #{forward.1} parent=1 // pred_check
      _
    $region47: #{forward.1} parent=1 // pred_check_branch
      %82 = sbr.rel (0) target = $region49
    $region48: #{forward.1} parent=1 // pred_region
      %83 = dma.done [#allocation8], 1024
    $region49: #{forward.1} parent=1 // pred_fallthru
      _
    %v84 = vld [vmem:[%s0] sm:$0xff]
    %v85 = vld [vmem:[%s0 + $0x8] sm:$0xff]
    %v86 = vld [vmem:[%s0 + $0x10] sm:$0xff]
    %v87 = vld [vmem:[#allocation2] sm:$0xff]
    %v88 = vld [vmem:[#allocation2 + $0x8] sm:$0xff]
    %v89 = vld [vmem:[#allocation2 + $0x10] sm:$0xff]
    %v90 = vld [vmem:[#allocation2 + $0x18] sm:$0xff]
    %v91 = vld [vmem:[#allocation2 + $0x20] sm:$0xff]
    %v92 = vld [vmem:[#allocation2 + $0x28] sm:$0xff]
    %v93 = vld [vmem:[#allocation2 + $0x30] sm:$0xff]
    %v94 = vld [vmem:[#allocation2 + $0x38] sm:$0xff]
    %v95 = vld [vmem:[#allocation4] sm:$0xff]
    %v96 = vld [vmem:[#allocation4 + $0x8] sm:$0xff]
    %v97 = vld [vmem:[#allocation4 + $0x10] sm:$0xff]
    %v98 = vld [vmem:[#allocation4 + $0x18] sm:$0xff]
    %v99 = vld [vmem:[#allocation4 + $0x20] sm:$0xff]
    %v100 = vld [vmem:[#allocation4 + $0x28] sm:$0xff]
    %v101 = vld [vmem:[#allocation4 + $0x30] sm:$0xff]
    %v102 = vld [vmem:[#allocation4 + $0x38] sm:$0xff]
    %104 = vset.pattern.permute.xlu0 0
    %105 = vperm.xlu0 %104, %v95
    %v106 = vpop.permute.xlu0 %105
    %109 = vset.pattern.permute.xlu0 0
    %110 = vperm.xlu0 %109, %v96
    %v111 = vpop.permute.xlu0 %110
    %114 = vset.pattern.permute.xlu0 0
    %115 = vperm.xlu0 %114, %v97
    %v116 = vpop.permute.xlu0 %115
    %119 = vset.pattern.permute.xlu0 0
    %120 = vperm.xlu0 %119, %v98
    %v121 = vpop.permute.xlu0 %120
    %124 = vset.pattern.permute.xlu0 0
    %125 = vperm.xlu0 %124, %v99
    %v126 = vpop.permute.xlu0 %125
    %129 = vset.pattern.permute.xlu0 0
    %130 = vperm.xlu0 %129, %v100
    %v131 = vpop.permute.xlu0 %130
    %134 = vset.pattern.permute.xlu0 0
    %135 = vperm.xlu0 %134, %v101
    %v136 = vpop.permute.xlu0 %135
    %139 = vset.pattern.permute.xlu0 0
    %140 = vperm.xlu0 %139, %v102
    %v141 = vpop.permute.xlu0 %140
    %vm143 = vcmask 195584
    %v145 = vsel %vm143, %v87, 0
    %v148 = vsel %vm143, %v88, 0
    %v151 = vsel %vm143, %v89, 0
    %v154 = vsel %vm143, %v90, 0
    %v157 = vsel %vm143, %v91, 0
    %v160 = vsel %vm143, %v92, 0
    %v163 = vsel %vm143, %v93, 0
    %v166 = vsel %vm143, %v94, 0
    %168 = vmatprep.subr.mxu0 0.0
    %169 = vmatpush1.msra.mxu0 %v84
    %170 = vmatprep.subr.mxu0 0.0
    %171 = vmatpush1.msra.mxu0 %v85
    %172 = vmatprep.subr.mxu0 0.0
    %173 = vmatpush1.msra.mxu0 %v86
    %174 = vmatprep.subr.mxu0 0.0
    %175 = vmatpush1.msra.mxu0 0.0
    %176 = vmatprep.subr.mxu0 0.0
    %177 = vmatpush1.msra.mxu0 0.0
    %178 = vmatprep.subr.mxu0 0.0
    %179 = vmatpush1.msra.mxu0 0.0
    %180 = vmatprep.subr.mxu0 0.0
    %181 = vmatpush1.msra.mxu0 0.0
    %182 = vmatprep.subr.mxu0 0.0
    %183 = vmatpush1.msra.mxu0 0.0
    %184 = vmatprep.subr.mxu0 0.0
    %185 = vmatpush1.msra.mxu0 0.0
    %186 = vmatprep.subr.mxu0 0.0
    %187 = vmatpush1.msra.mxu0 0.0
    %188 = vmatprep.subr.mxu0 0.0
    %189 = vmatpush1.msra.mxu0 0.0
    %190 = vmatprep.subr.mxu0 0.0
    %191 = vmatpush1.msra.mxu0 0.0
    %192 = vmatprep.subr.mxu0 0.0
    %193 = vmatpush1.msra.mxu0 0.0
    %194 = vmatprep.subr.mxu0 0.0
    %195 = vmatpush1.msra.mxu0 0.0
    %196 = vmatprep.subr.mxu0 0.0
    %197 = vmatpush1.msra.mxu0 0.0
    %198 = vmatprep.subr.mxu0 0.0
    %199 = vmatpush1.msra.mxu0 0.0
    %200 = vmatprep.subr.mxu0 0.0
    %201 = vmatpush1.msra.mxu0 0.0
    %202 = vmatprep.subr.mxu0 0.0
    %203 = vmatpush1.msra.mxu0 0.0
    %204 = vmatprep.subr.mxu0 0.0
    %205 = vmatpush1.msra.mxu0 0.0
    %206 = vmatprep.subr.mxu0 0.0
    %207 = vmatpush1.msra.mxu0 0.0
    %208 = vmatprep.subr.mxu0 0.0
    %209 = vmatpush1.msra.mxu0 0.0
    %210 = vmatprep.subr.mxu0 0.0
    %211 = vmatpush1.msra.mxu0 0.0
    %212 = vmatprep.subr.mxu0 0.0
    %213 = vmatpush1.msra.mxu0 0.0
    %214 = vmatprep.subr.mxu0 0.0
    %215 = vmatpush1.msra.mxu0 0.0
    %216 = vmatprep.subr.mxu0 0.0
    %217 = vmatpush1.msra.mxu0 0.0
    %218 = vmatprep.subr.mxu0 0.0
    %219 = vmatpush1.msra.mxu0 0.0
    %220 = vmatprep.subr.mxu0 0.0
    %221 = vmatpush1.msra.mxu0 0.0
    %222 = vmatprep.subr.mxu0 0.0
    %223 = vmatpush1.msra.mxu0 0.0
    %224 = vmatprep.subr.mxu0 0.0
    %225 = vmatpush1.msra.mxu0 0.0
    %226 = vmatprep.subr.mxu0 0.0
    %227 = vmatpush1.msra.mxu0 0.0
    %228 = vmatprep.subr.mxu0 0.0
    %229 = vmatpush1.msra.mxu0 0.0
    %230 = vmatprep.subr.mxu0 0.0
    %231 = vmatpush1.msra.mxu0 0.0
    %232 = vmatprep.mubr.f32.mxu0 0.0
    %233 = vmatmul.mubr.f32.gmra.mrb[0].mxu0 %v145
    %v234 = vpop.f32.mrb[0].mxu0
    %v235 = vadd.f32 %v106, %v234
    %v236 = vpop.f32.mrb[0].mxu0
    %237 = vmatprep.mubr.f32.mxu0 0.0
    %238 = vmatmul.mubr.f32.gmra.mrb[0].mxu0 %v148
    %v239 = vpop.f32.mrb[0].mxu0
    %v240 = vadd.f32 %v111, %v239
    %v241 = vpop.f32.mrb[0].mxu0
    %242 = vmatprep.mubr.f32.mxu0 0.0
    %243 = vmatmul.mubr.f32.gmra.mrb[0].mxu0 %v151
    %v244 = vpop.f32.mrb[0].mxu0
    %v245 = vadd.f32 %v116, %v244
    %v246 = vpop.f32.mrb[0].mxu0
    %247 = vmatprep.mubr.f32.mxu0 0.0
    %248 = vmatmul.mubr.f32.gmra.mrb[0].mxu0 %v154
    %v249 = vpop.f32.mrb[0].mxu0
    %v250 = vadd.f32 %v121, %v249
    %v251 = vpop.f32.mrb[0].mxu0
    %252 = vmatprep.mubr.f32.mxu0 0.0
    %253 = vmatmul.mubr.f32.gmra.mrb[0].mxu0 %v157
    %v254 = vpop.f32.mrb[0].mxu0
    %v255 = vadd.f32 %v126, %v254
    %v256 = vpop.f32.mrb[0].mxu0
    %257 = vmatprep.mubr.f32.mxu0 0.0
    %258 = vmatmul.mubr.f32.gmra.mrb[0].mxu0 %v160
    %v259 = vpop.f32.mrb[0].mxu0
    %v260 = vadd.f32 %v131, %v259
    %v261 = vpop.f32.mrb[0].mxu0
    %262 = vmatprep.mubr.f32.mxu0 0.0
    %263 = vmatmul.mubr.f32.gmra.mrb[0].mxu0 %v163
    %v264 = vpop.f32.mrb[0].mxu0
    %v265 = vadd.f32 %v136, %v264
    %v266 = vpop.f32.mrb[0].mxu0
    %267 = vmatprep.mubr.f32.mxu0 0.0
    %268 = vmatmul.mubr.f32.gmra.mrb[0].mxu0 %v166
    %v269 = vpop.f32.mrb[0].mxu0
    %v270 = vadd.f32 %v141, %v269
    %v271 = vpop.f32.mrb[0].mxu0
    %272 = vdwg.mxu0
    %v273 = vmax.f32 %v235, 0.0
    %v274 = vmax.f32 %v240, 0.0
    %v275 = vmax.f32 %v245, 0.0
    %v276 = vmax.f32 %v250, 0.0
    %v277 = vmax.f32 %v255, 0.0
    %v278 = vmax.f32 %v260, 0.0
    %v279 = vmax.f32 %v265, 0.0
    %v280 = vmax.f32 %v270, 0.0
    %v281 = vld [vmem:[#allocation6] sm:$0xff]
    %v282 = vld [vmem:[#allocation6 + $0x8] sm:$0xff]
    %v283 = vld [vmem:[#allocation6 + $0x10] sm:$0xff]
    %v284 = vld [vmem:[#allocation6 + $0x18] sm:$0xff]
    %v285 = vld [vmem:[#allocation6 + $0x20] sm:$0xff]
    %v286 = vld [vmem:[#allocation6 + $0x28] sm:$0xff]
    %v287 = vld [vmem:[#allocation6 + $0x30] sm:$0xff]
    %v288 = vld [vmem:[#allocation6 + $0x38] sm:$0xff]
    %v289 = vld [vmem:[#allocation7] sm:$0xff]
    %v290 = vld [vmem:[#allocation7 + $0x8] sm:$0xff]
    %v291 = vld [vmem:[#allocation7 + $0x10] sm:$0xff]
    %v292 = vld [vmem:[#allocation7 + $0x18] sm:$0xff]
    %v293 = vld [vmem:[#allocation7 + $0x20] sm:$0xff]
    %v294 = vld [vmem:[#allocation7 + $0x28] sm:$0xff]
    %v295 = vld [vmem:[#allocation7 + $0x30] sm:$0xff]
    %v296 = vld [vmem:[#allocation7 + $0x38] sm:$0xff]
    %298 = vset.pattern.permute.xlu0 0
    %299 = vperm.xlu0 %298, %v289
    %v300 = vpop.permute.xlu0 %299
    %303 = vset.pattern.permute.xlu0 0
    %304 = vperm.xlu0 %303, %v290
    %v305 = vpop.permute.xlu0 %304
    %308 = vset.pattern.permute.xlu0 0
    %309 = vperm.xlu0 %308, %v291
    %v310 = vpop.permute.xlu0 %309
    %313 = vset.pattern.permute.xlu0 0
    %314 = vperm.xlu0 %313, %v292
    %v315 = vpop.permute.xlu0 %314
    %318 = vset.pattern.permute.xlu0 0
    %319 = vperm.xlu0 %318, %v293
    %v320 = vpop.permute.xlu0 %319
    %323 = vset.pattern.permute.xlu0 0
    %324 = vperm.xlu0 %323, %v294
    %v325 = vpop.permute.xlu0 %324
    %328 = vset.pattern.permute.xlu0 0
    %329 = vperm.xlu0 %328, %v295
    %v330 = vpop.permute.xlu0 %329
    %333 = vset.pattern.permute.xlu0 0
    %334 = vperm.xlu0 %333, %v296
    %v335 = vpop.permute.xlu0 %334
    %vm337 = vcmask 523264
    %v339 = vsel %vm337, %v281, 0
    %v342 = vsel %vm337, %v282, 0
    %v345 = vsel %vm337, %v283, 0
    %v348 = vsel %vm337, %v284, 0
    %v351 = vsel %vm337, %v285, 0
    %v354 = vsel %vm337, %v286, 0
    %v357 = vsel %vm337, %v287, 0
    %v360 = vsel %vm337, %v288, 0
    %362 = vmatprep.subr.mxu0 0.0
    %363 = vmatpush1.msra.mxu0 %v273
    %364 = vmatprep.subr.mxu0 0.0
    %365 = vmatpush1.msra.mxu0 %v274
    %366 = vmatprep.subr.mxu0 0.0
    %367 = vmatpush1.msra.mxu0 %v275
    %368 = vmatprep.subr.mxu0 0.0
    %369 = vmatpush1.msra.mxu0 %v276
    %370 = vmatprep.subr.mxu0 0.0
    %371 = vmatpush1.msra.mxu0 %v277
    %372 = vmatprep.subr.mxu0 0.0
    %373 = vmatpush1.msra.mxu0 %v278
    %374 = vmatprep.subr.mxu0 0.0
    %375 = vmatpush1.msra.mxu0 %v279
    %376 = vmatprep.subr.mxu0 0.0
    %377 = vmatpush1.msra.mxu0 %v280
    %378 = vmatprep.subr.mxu0 0.0
    %379 = vmatpush1.msra.mxu0 0.0
    %380 = vmatprep.subr.mxu0 0.0
    %381 = vmatpush1.msra.mxu0 0.0
    %382 = vmatprep.subr.mxu0 0.0
    %383 = vmatpush1.msra.mxu0 0.0
    %384 = vmatprep.subr.mxu0 0.0
    %385 = vmatpush1.msra.mxu0 0.0
    %386 = vmatprep.subr.mxu0 0.0
    %387 = vmatpush1.msra.mxu0 0.0
    %388 = vmatprep.subr.mxu0 0.0
    %389 = vmatpush1.msra.mxu0 0.0
    %390 = vmatprep.subr.mxu0 0.0
    %391 = vmatpush1.msra.mxu0 0.0
    %392 = vmatprep.subr.mxu0 0.0
    %393 = vmatpush1.msra.mxu0 0.0
    %394 = vmatprep.subr.mxu0 0.0
    %395 = vmatpush1.msra.mxu0 0.0
    %396 = vmatprep.subr.mxu0 0.0
    %397 = vmatpush1.msra.mxu0 0.0
    %398 = vmatprep.subr.mxu0 0.0
    %399 = vmatpush1.msra.mxu0 0.0
    %400 = vmatprep.subr.mxu0 0.0
    %401 = vmatpush1.msra.mxu0 0.0
    %402 = vmatprep.subr.mxu0 0.0
    %403 = vmatpush1.msra.mxu0 0.0
    %404 = vmatprep.subr.mxu0 0.0
    %405 = vmatpush1.msra.mxu0 0.0
    %406 = vmatprep.subr.mxu0 0.0
    %407 = vmatpush1.msra.mxu0 0.0
    %408 = vmatprep.subr.mxu0 0.0
    %409 = vmatpush1.msra.mxu0 0.0
    %410 = vmatprep.subr.mxu0 0.0
    %411 = vmatpush1.msra.mxu0 0.0
    %412 = vmatprep.subr.mxu0 0.0
    %413 = vmatpush1.msra.mxu0 0.0
    %414 = vmatprep.subr.mxu0 0.0
    %415 = vmatpush1.msra.mxu0 0.0
    %416 = vmatprep.subr.mxu0 0.0
    %417 = vmatpush1.msra.mxu0 0.0
    %418 = vmatprep.subr.mxu0 0.0
    %419 = vmatpush1.msra.mxu0 0.0
    %420 = vmatprep.subr.mxu0 0.0
    %421 = vmatpush1.msra.mxu0 0.0
    %422 = vmatprep.subr.mxu0 0.0
    %423 = vmatpush1.msra.mxu0 0.0
    %424 = vmatprep.subr.mxu0 0.0
    %425 = vmatpush1.msra.mxu0 0.0
    %426 = vmatprep.mubr.f32.mxu0 0.0
    %427 = vmatmul.mubr.f32.gmra.mrb[0].mxu0 %v339
    %v428 = vpop.f32.mrb[0].mxu0
    %v429 = vadd.f32 %v300, %v428
    %v430 = vpop.f32.mrb[0].mxu0
    %431 = vmatprep.mubr.f32.mxu0 0.0
    %432 = vmatmul.mubr.f32.gmra.mrb[0].mxu0 %v342
    %v433 = vpop.f32.mrb[0].mxu0
    %v434 = vadd.f32 %v305, %v433
    %v435 = vpop.f32.mrb[0].mxu0
    %436 = vmatprep.mubr.f32.mxu0 0.0
    %437 = vmatmul.mubr.f32.gmra.mrb[0].mxu0 %v345
    %v438 = vpop.f32.mrb[0].mxu0
    %v439 = vadd.f32 %v310, %v438
    %v440 = vpop.f32.mrb[0].mxu0
    %441 = vmatprep.mubr.f32.mxu0 0.0
    %442 = vmatmul.mubr.f32.gmra.mrb[0].mxu0 %v348
    %v443 = vpop.f32.mrb[0].mxu0
    %v444 = vadd.f32 %v315, %v443
    %v445 = vpop.f32.mrb[0].mxu0
    %446 = vmatprep.mubr.f32.mxu0 0.0
    %447 = vmatmul.mubr.f32.gmra.mrb[0].mxu0 %v351
    %v448 = vpop.f32.mrb[0].mxu0
    %v449 = vadd.f32 %v320, %v448
    %v450 = vpop.f32.mrb[0].mxu0
    %451 = vmatprep.mubr.f32.mxu0 0.0
    %452 = vmatmul.mubr.f32.gmra.mrb[0].mxu0 %v354
    %v453 = vpop.f32.mrb[0].mxu0
    %v454 = vadd.f32 %v325, %v453
    %v455 = vpop.f32.mrb[0].mxu0
    %456 = vmatprep.mubr.f32.mxu0 0.0
    %457 = vmatmul.mubr.f32.gmra.mrb[0].mxu0 %v357
    %v458 = vpop.f32.mrb[0].mxu0
    %v459 = vadd.f32 %v330, %v458
    %v460 = vpop.f32.mrb[0].mxu0
    %461 = vmatprep.mubr.f32.mxu0 0.0
    %462 = vmatmul.mubr.f32.gmra.mrb[0].mxu0 %v360
    %v463 = vpop.f32.mrb[0].mxu0
    %v464 = vadd.f32 %v335, %v463
    %v465 = vpop.f32.mrb[0].mxu0
    %466 = vdwg.mxu0
    %v467 = vmax.f32 %v429, 0.0
    %v468 = vmax.f32 %v434, 0.0
    %v469 = vmax.f32 %v439, 0.0
    %v470 = vmax.f32 %v444, 0.0
    %v471 = vmax.f32 %v449, 0.0
    %v472 = vmax.f32 %v454, 0.0
    %v473 = vmax.f32 %v459, 0.0
    %v474 = vmax.f32 %v464, 0.0
    %v475 = vld [vmem:[%s5] sm:$0xff]
    %v476 = vld [vmem:[%s5 + $0x8] sm:$0xff]
    %v477 = vld [vmem:[%s5 + $0x10] sm:$0xff]
    %v478 = vld [vmem:[%s5 + $0x18] sm:$0xff]
    %v479 = vld [vmem:[%s5 + $0x20] sm:$0xff]
    %v480 = vld [vmem:[%s5 + $0x28] sm:$0xff]
    %v481 = vld [vmem:[%s5 + $0x30] sm:$0xff]
    %v482 = vld [vmem:[%s5 + $0x38] sm:$0xff]
    %v483 = vld [vmem:[%s6] sm:$0xff]
    %v484 = vld [vmem:[%s6 + $0x8] sm:$0xff]
    %v485 = vld [vmem:[%s6 + $0x10] sm:$0xff]
    %v486 = vld [vmem:[%s6 + $0x18] sm:$0xff]
    %v487 = vld [vmem:[%s6 + $0x20] sm:$0xff]
    %v488 = vld [vmem:[%s6 + $0x28] sm:$0xff]
    %v489 = vld [vmem:[%s6 + $0x30] sm:$0xff]
    %v490 = vld [vmem:[%s6 + $0x38] sm:$0xff]
    %492 = vset.pattern.permute.xlu0 0
    %493 = vperm.xlu0 %492, %v483
    %v494 = vpop.permute.xlu0 %493
    %497 = vset.pattern.permute.xlu0 0
    %498 = vperm.xlu0 %497, %v484
    %v499 = vpop.permute.xlu0 %498
    %502 = vset.pattern.permute.xlu0 0
    %503 = vperm.xlu0 %502, %v485
    %v504 = vpop.permute.xlu0 %503
    %507 = vset.pattern.permute.xlu0 0
    %508 = vperm.xlu0 %507, %v486
    %v509 = vpop.permute.xlu0 %508
    %512 = vset.pattern.permute.xlu0 0
    %513 = vperm.xlu0 %512, %v487
    %v514 = vpop.permute.xlu0 %513
    %517 = vset.pattern.permute.xlu0 0
    %518 = vperm.xlu0 %517, %v488
    %v519 = vpop.permute.xlu0 %518
    %522 = vset.pattern.permute.xlu0 0
    %523 = vperm.xlu0 %522, %v489
    %v524 = vpop.permute.xlu0 %523
    %527 = vset.pattern.permute.xlu0 0
    %528 = vperm.xlu0 %527, %v490
    %v529 = vpop.permute.xlu0 %528
    %v532 = vsel %vm337, %v475, 0
    %v535 = vsel %vm337, %v476, 0
    %v538 = vsel %vm337, %v477, 0
    %v541 = vsel %vm337, %v478, 0
    %v544 = vsel %vm337, %v479, 0
    %v547 = vsel %vm337, %v480, 0
    %v550 = vsel %vm337, %v481, 0
    %v553 = vsel %vm337, %v482, 0
    %555 = vmatprep.subr.mxu0 0.0
    %556 = vmatpush1.msra.mxu0 %v467
    %557 = vmatprep.subr.mxu0 0.0
    %558 = vmatpush1.msra.mxu0 %v468
    %559 = vmatprep.subr.mxu0 0.0
    %560 = vmatpush1.msra.mxu0 %v469
    %561 = vmatprep.subr.mxu0 0.0
    %562 = vmatpush1.msra.mxu0 %v470
    %563 = vmatprep.subr.mxu0 0.0
    %564 = vmatpush1.msra.mxu0 %v471
    %565 = vmatprep.subr.mxu0 0.0
    %566 = vmatpush1.msra.mxu0 %v472
    %567 = vmatprep.subr.mxu0 0.0
    %568 = vmatpush1.msra.mxu0 %v473
    %569 = vmatprep.subr.mxu0 0.0
    %570 = vmatpush1.msra.mxu0 %v474
    %571 = vmatprep.subr.mxu0 0.0
    %572 = vmatpush1.msra.mxu0 0.0
    %573 = vmatprep.subr.mxu0 0.0
    %574 = vmatpush1.msra.mxu0 0.0
    %575 = vmatprep.subr.mxu0 0.0
    %576 = vmatpush1.msra.mxu0 0.0
    %577 = vmatprep.subr.mxu0 0.0
    %578 = vmatpush1.msra.mxu0 0.0
    %579 = vmatprep.subr.mxu0 0.0
    %580 = vmatpush1.msra.mxu0 0.0
    %581 = vmatprep.subr.mxu0 0.0
    %582 = vmatpush1.msra.mxu0 0.0
    %583 = vmatprep.subr.mxu0 0.0
    %584 = vmatpush1.msra.mxu0 0.0
    %585 = vmatprep.subr.mxu0 0.0
    %586 = vmatpush1.msra.mxu0 0.0
    %587 = vmatprep.subr.mxu0 0.0
    %588 = vmatpush1.msra.mxu0 0.0
    %589 = vmatprep.subr.mxu0 0.0
    %590 = vmatpush1.msra.mxu0 0.0
    %591 = vmatprep.subr.mxu0 0.0
    %592 = vmatpush1.msra.mxu0 0.0
    %593 = vmatprep.subr.mxu0 0.0
    %594 = vmatpush1.msra.mxu0 0.0
    %595 = vmatprep.subr.mxu0 0.0
    %596 = vmatpush1.msra.mxu0 0.0
    %597 = vmatprep.subr.mxu0 0.0
    %598 = vmatpush1.msra.mxu0 0.0
    %599 = vmatprep.subr.mxu0 0.0
    %600 = vmatpush1.msra.mxu0 0.0
    %601 = vmatprep.subr.mxu0 0.0
    %602 = vmatpush1.msra.mxu0 0.0
    %603 = vmatprep.subr.mxu0 0.0
    %604 = vmatpush1.msra.mxu0 0.0
    %605 = vmatprep.subr.mxu0 0.0
    %606 = vmatpush1.msra.mxu0 0.0
    %607 = vmatprep.subr.mxu0 0.0
    %608 = vmatpush1.msra.mxu0 0.0
    %609 = vmatprep.subr.mxu0 0.0
    %610 = vmatpush1.msra.mxu0 0.0
    %611 = vmatprep.subr.mxu0 0.0
    %612 = vmatpush1.msra.mxu0 0.0
    %613 = vmatprep.subr.mxu0 0.0
    %614 = vmatpush1.msra.mxu0 0.0
    %615 = vmatprep.subr.mxu0 0.0
    %616 = vmatpush1.msra.mxu0 0.0
    %617 = vmatprep.subr.mxu0 0.0
    %618 = vmatpush1.msra.mxu0 0.0
    %619 = vmatprep.mubr.f32.mxu0 0.0
    %620 = vmatmul.mubr.f32.gmra.mrb[0].mxu0 %v532
    %v621 = vpop.f32.mrb[0].mxu0
    %v622 = vadd.f32 %v494, %v621
    %v623 = vpop.f32.mrb[0].mxu0
    %624 = vmatprep.mubr.f32.mxu0 0.0
    %625 = vmatmul.mubr.f32.gmra.mrb[0].mxu0 %v535
    %v626 = vpop.f32.mrb[0].mxu0
    %v627 = vadd.f32 %v499, %v626
    %v628 = vpop.f32.mrb[0].mxu0
    %629 = vmatprep.mubr.f32.mxu0 0.0
    %630 = vmatmul.mubr.f32.gmra.mrb[0].mxu0 %v538
    %v631 = vpop.f32.mrb[0].mxu0
    %v632 = vadd.f32 %v504, %v631
    %v633 = vpop.f32.mrb[0].mxu0
    %634 = vmatprep.mubr.f32.mxu0 0.0
    %635 = vmatmul.mubr.f32.gmra.mrb[0].mxu0 %v541
    %v636 = vpop.f32.mrb[0].mxu0
    %v637 = vadd.f32 %v509, %v636
    %v638 = vpop.f32.mrb[0].mxu0
    %639 = vmatprep.mubr.f32.mxu0 0.0
    %640 = vmatmul.mubr.f32.gmra.mrb[0].mxu0 %v544
    %v641 = vpop.f32.mrb[0].mxu0
    %v642 = vadd.f32 %v514, %v641
    %v643 = vpop.f32.mrb[0].mxu0
    %644 = vmatprep.mubr.f32.mxu0 0.0
    %645 = vmatmul.mubr.f32.gmra.mrb[0].mxu0 %v547
    %v646 = vpop.f32.mrb[0].mxu0
    %v647 = vadd.f32 %v519, %v646
    %v648 = vpop.f32.mrb[0].mxu0
    %649 = vmatprep.mubr.f32.mxu0 0.0
    %650 = vmatmul.mubr.f32.gmra.mrb[0].mxu0 %v550
    %v651 = vpop.f32.mrb[0].mxu0
    %v652 = vadd.f32 %v524, %v651
    %v653 = vpop.f32.mrb[0].mxu0
    %654 = vmatprep.mubr.f32.mxu0 0.0
    %655 = vmatmul.mubr.f32.gmra.mrb[0].mxu0 %v553
    %v656 = vpop.f32.mrb[0].mxu0
    %v657 = vadd.f32 %v529, %v656
    %v658 = vpop.f32.mrb[0].mxu0
    %659 = vdwg.mxu0
    %v660 = vmul.f32 %v622, %v642
    %v661 = vmul.f32 %v627, %v647
    %v662 = vmul.f32 %v632, %v652
    %v663 = vmul.f32 %v637, %v657
    %v664 = vld [vmem:[%s7] sm:$0xff]
    %vm665 = vcmask 261120
    %v667 = vsel %vm665, %v664, 0
    %669 = vmatprep.subr.mxu0 0.0
    %670 = vmatpush1.msra.mxu0 %v660
    %671 = vmatprep.subr.mxu0 0.0
    %672 = vmatpush1.msra.mxu0 %v661
    %673 = vmatprep.subr.mxu0 0.0
    %674 = vmatpush1.msra.mxu0 %v662
    %675 = vmatprep.subr.mxu0 0.0
    %676 = vmatpush1.msra.mxu0 %v663
    %677 = vmatprep.subr.mxu0 0.0
    %678 = vmatpush1.msra.mxu0 0.0
    %679 = vmatprep.subr.mxu0 0.0
    %680 = vmatpush1.msra.mxu0 0.0
    %681 = vmatprep.subr.mxu0 0.0
    %682 = vmatpush1.msra.mxu0 0.0
    %683 = vmatprep.subr.mxu0 0.0
    %684 = vmatpush1.msra.mxu0 0.0
    %685 = vmatprep.subr.mxu0 0.0
    %686 = vmatpush1.msra.mxu0 0.0
    %687 = vmatprep.subr.mxu0 0.0
    %688 = vmatpush1.msra.mxu0 0.0
    %689 = vmatprep.subr.mxu0 0.0
    %690 = vmatpush1.msra.mxu0 0.0
    %691 = vmatprep.subr.mxu0 0.0
    %692 = vmatpush1.msra.mxu0 0.0
    %693 = vmatprep.subr.mxu0 0.0
    %694 = vmatpush1.msra.mxu0 0.0
    %695 = vmatprep.subr.mxu0 0.0
    %696 = vmatpush1.msra.mxu0 0.0
    %697 = vmatprep.subr.mxu0 0.0
    %698 = vmatpush1.msra.mxu0 0.0
    %699 = vmatprep.subr.mxu0 0.0
    %700 = vmatpush1.msra.mxu0 0.0
    %701 = vmatprep.subr.mxu0 0.0
    %702 = vmatpush1.msra.mxu0 0.0
    %703 = vmatprep.subr.mxu0 0.0
    %704 = vmatpush1.msra.mxu0 0.0
    %705 = vmatprep.subr.mxu0 0.0
    %706 = vmatpush1.msra.mxu0 0.0
    %707 = vmatprep.subr.mxu0 0.0
    %708 = vmatpush1.msra.mxu0 0.0
    %709 = vmatprep.subr.mxu0 0.0
    %710 = vmatpush1.msra.mxu0 0.0
    %711 = vmatprep.subr.mxu0 0.0
    %712 = vmatpush1.msra.mxu0 0.0
    %713 = vmatprep.subr.mxu0 0.0
    %714 = vmatpush1.msra.mxu0 0.0
    %715 = vmatprep.subr.mxu0 0.0
    %716 = vmatpush1.msra.mxu0 0.0
    %717 = vmatprep.subr.mxu0 0.0
    %718 = vmatpush1.msra.mxu0 0.0
    %719 = vmatprep.subr.mxu0 0.0
    %720 = vmatpush1.msra.mxu0 0.0
    %721 = vmatprep.subr.mxu0 0.0
    %722 = vmatpush1.msra.mxu0 0.0
    %723 = vmatprep.subr.mxu0 0.0
    %724 = vmatpush1.msra.mxu0 0.0
    %725 = vmatprep.subr.mxu0 0.0
    %726 = vmatpush1.msra.mxu0 0.0
    %727 = vmatprep.subr.mxu0 0.0
    %728 = vmatpush1.msra.mxu0 0.0
    %729 = vmatprep.subr.mxu0 0.0
    %730 = vmatpush1.msra.mxu0 0.0
    %731 = vmatprep.subr.mxu0 0.0
    %732 = vmatpush1.msra.mxu0 0.0
    %733 = vmatprep.mubr.f32.mxu0 0.0
    %734 = vmatmul.mubr.f32.gmra.mrb[0].mxu0 %v667
    %v735 = vpop.f32.mrb[0].mxu0
    %v736 = vadd.f32 0.0, %v735
    %v737 = vpop.f32.mrb[0].mxu0
    %738 = vdwg.mxu0
    %739 = vst [vmem:[%s8] sm:$0xff] %v736
    // Predicated region
    $region50: #{forward.1} parent=1 // pred_check
      _
    $region51: #{forward.1} parent=1 // pred_check_branch
      %741 = sbr.rel (0) target = $region53
    $region52: #{forward.1} parent=1 // pred_region
      _
    $region53: #{forward.1} parent=1 // pred_fallthru
      _
    // Predicated region
    $region54: #{forward.1} parent=1 // pred_check
      _
    $region55: #{forward.1} parent=1 // pred_check_branch
      %743 = sbr.rel (0) target = $region57
    $region56: #{forward.1} parent=1 // pred_region
      _
    $region57: #{forward.1} parent=1 // pred_fallthru
      _
    %744 = vsyncpa [#allocation3], 1
    %745 = vsyncpa [#allocation5], 1
    %746 = vsyncpa [#allocation8], 1

</llo_original>
